<compile_context>
chip_gen: v7x
topology: tpu7x:2x2x1
jax: 0.10.0
libtpu: 0.0.40
codegen_flags: <defaults>
</compile_context>

<pallas_src>
import functools

import jax
import jax.numpy as jnp
from jax.experimental import pallas as pl
from jax.experimental.pallas import tpu as pltpu

EPS = 1e-8
LANES = 128
NEG = -1e30        # fill for padded candidate columns; exp() underflows to exactly 0


def _round_up(x, m):
    return ((x + m - 1) // m) * m


def _softmax_ce_epilogue(scores, i, out_ref, *, bp_valid, skip_max, exact):
    """probs = softmax(scores, axis=1); per_row = logsumexp_j exp(probs) - probs[r,r]."""
    tb, bp_pad = scores.shape
    col = jax.lax.broadcasted_iota(jnp.int32, (tb, bp_pad), 1)
    if bp_pad != bp_valid:
        # padded candidate columns must not contribute to max / denom / lse
        scores = jnp.where(col < bp_valid, scores, NEG)

    # Diagonal pulled from *scores* (pre-softmax) so the masked XLU reduce overlaps
    # with the EUP exp passes instead of extending the dependency chain.
    row_g = i * tb + jax.lax.broadcasted_iota(jnp.int32, (tb, bp_pad), 0)
    diag_score = jnp.sum(jnp.where(row_g == col, scores, 0.0), axis=1, keepdims=True)

    if skip_max:
        # scores are cosine similarities / tau with |1/tau| <= 80 (statically known),
        # so exp cannot overflow -> skip the row-max reduce + subtract.
        ex = jnp.exp(scores)
        diag_num = jnp.exp(diag_score)
    else:
        m = jnp.max(scores, axis=1, keepdims=True)
        ex = jnp.exp(scores - m)
        diag_num = jnp.exp(diag_score - m)

    denom = jnp.sum(ex, axis=1, keepdims=True)
    inv_denom = (1.0 / denom) if exact else pl.reciprocal(denom, approx=True)
    probs = ex * inv_denom                 # [TB, B'_pad]; padded columns exactly 0
    diag_prob = diag_num * inv_denom       # [TB, 1] == probs[r, r]

    # cross_entropy(probs, arange): probs in [0,1] so exp(probs) cannot overflow,
    # no second max pass.  Padded columns would contribute exp(0)=1 -> mask them.
    e_probs = jnp.exp(probs)
    if bp_pad != bp_valid:
        e_probs = jnp.where(col < bp_valid, e_probs, 0.0)
    lse = jnp.log(jnp.sum(e_probs, axis=1, keepdims=True))
    per_row = lse - diag_prob                               # [TB, 1]
    out_ref[...] = jnp.broadcast_to(per_row, (tb, LANES))   # lane-dense store


def clip_loss_kernel(est_ref, cand_ref, out_ref, *scratch,
                     bp_valid, num_k, skip_max, exact):
    """Grid = (B tiles, K tiles).  est_ref [TB, TK] and cand_ref [TK, B'_pad] are
    already L2-normalized / (1/tau)-scaled and cast to the MXU dtype upstream."""
    i = pl.program_id(0)

    if num_k == 1:
        # Resident candidate: one canonical MXU matmul, no accumulator round-trip.
        scores = jnp.dot(est_ref[...], cand_ref[...],
                         preferred_element_type=jnp.float32)
        _softmax_ce_epilogue(scores, i, out_ref, bp_valid=bp_valid,
                             skip_max=skip_max, exact=exact)
    else:
        # K-streamed candidate: f32 scores accumulator in VMEM scratch; epilogue last.
        acc_ref, = scratch
        k = pl.program_id(1)

        @pl.when(k == 0)
        def _():
            acc_ref[...] = jnp.zeros_like(acc_ref)

        acc_ref[...] += jnp.dot(est_ref[...], cand_ref[...],
                                preferred_element_type=jnp.float32)

        @pl.when(k == num_k - 1)
        def _():
            _softmax_ce_epilogue(acc_ref[...], i, out_ref, bp_valid=bp_valid,
                                 skip_max=skip_max, exact=exact)


def clip_loss_2d(estimate, candidate, temp_tau=1.0, *,
                 matmul_dtype=jnp.bfloat16, vmem_budget_bytes=40 * (1 << 20)):
    """estimate: [B, C, T], candidate: [B', C, T] with B <= B'. Returns scalar loss."""
    assert estimate.shape[0] <= candidate.shape[0], \
        "need at least as many targets as estimates"
    B = int(estimate.shape[0])
    Bp = int(candidate.shape[0])
    N = int(estimate.shape[1]) * int(estimate.shape[2])
    assert int(candidate.shape[1]) * int(candidate.shape[2]) == N

    e2 = estimate.reshape(B, N).astype(jnp.float32)
    c2 = candidate.reshape(Bp, N).astype(jnp.float32)

    # --- fold all per-row scaling into the operands (one fused XLA pass each) ----
    inv_ne = 1.0 / (EPS + jnp.sqrt(jnp.sum(e2 * e2, axis=1, keepdims=True)))
    e2 = e2 * inv_ne                                           # unit-norm rows
    inv_tau = 1.0 / jnp.asarray(temp_tau, jnp.float32)
    inv_nc = inv_tau / (EPS + jnp.sqrt(jnp.sum(c2 * c2, axis=1, keepdims=True)))
    c2 = c2 * inv_nc                                           # norm + 1/tau folded

    itemsize = jnp.dtype(matmul_dtype).itemsize
    exact = jnp.dtype(matmul_dtype) == jnp.dtype(jnp.float32)
    sub = max(8, 32 // itemsize)          # sublane pack: 8 f32 / 16 bf16 / 32 fp8

    # --- tile_b: MXU-friendly, >= 2 tiles when possible (v7x megacore) ----------
    if B >= 512:
        tile_b = 256
    elif B >= 256:
        tile_b = 128
    else:
        tile_b = max(sub, min(128, _round_up(-(-B // 2), sub)))
    b_pad = _round_up(B, tile_b)
    num_tiles = b_pad // tile_b

    # --- lane/sublane friendly padding (padded columns masked in-kernel) --------
    n_pad = _round_up(N, LANES)
    bp_pad = _round_up(Bp, LANES)
    e2 = jnp.pad(e2, ((0, b_pad - B), (0, n_pad - N))).astype(matmul_dtype)
    cand_t = jnp.pad(c2, ((0, bp_pad - Bp), (0, n_pad - N))).T.astype(matmul_dtype)

    # --- VMEM footprint -> resident vs. K-streamed candidate --------------------
    def footprint(tk, cand_bufs):
        return (2 * tile_b * tk * itemsize            # double-buffered estimate
                + cand_bufs * tk * bp_pad * itemsize  # candidate tile(s)
                + (0 if tk == n_pad else tile_b * bp_pad * 4)  # f32 accumulator
                + 2 * tile_b * LANES * 4)             # double-buffered out tile

    if footprint(n_pad, 1) <= vmem_budget_bytes:
        tk = n_pad                                    # fully resident candidate
    else:
        tk = LANES
        q = n_pad // LANES
        for d in sorted((d for d in range(1, q + 1) if q % d == 0), reverse=True):
            if footprint(d * LANES, 2) <= vmem_budget_bytes:
                tk = d * LANES
                break
    num_k = n_pad // tk

    cand_bufs = 1 if num_k == 1 else 2
    need = footprint(tk, cand_bufs)
    vmem_limit = int(min(64 * (1 << 20),
                         max(16 * (1 << 20), need * 3 // 2 + (1 << 20))))

    if num_k == 1:
        # constant index_map -> double buffering buys nothing; halve the slab
        cand_spec = pl.BlockSpec((tk, bp_pad), lambda i, k: (k, 0),
                                 pipeline_mode=pl.Buffered(1))
        scratch_shapes = []
    else:
        cand_spec = pl.BlockSpec((tk, bp_pad), lambda i, k: (k, 0))
        scratch_shapes = [pltpu.VMEM((tile_b, bp_pad), jnp.float32)]

    # skip the first max-subtraction only when 1/tau is statically bounded
    skip_max = (isinstance(temp_tau, (int, float)) and float(temp_tau) != 0.0
                and abs(1.0 / float(temp_tau)) <= 80.0)

    kernel = functools.partial(clip_loss_kernel, bp_valid=Bp, num_k=num_k,
                               skip_max=skip_max, exact=exact)

    per_row = pl.pallas_call(
        kernel,
        out_shape=jax.ShapeDtypeStruct((b_pad, LANES), jnp.float32),
        grid=(num_tiles, num_k),
        in_specs=[
            pl.BlockSpec((tile_b, tk), lambda i, k: (i, k)),   # estimate tile
            cand_spec,                                          # candidate tile(s)
        ],
        out_specs=pl.BlockSpec((tile_b, LANES), lambda i, k: (i, 0)),
        scratch_shapes=scratch_shapes,
        compiler_params=pltpu.CompilerParams(
            dimension_semantics=("parallel", "arbitrary"),
            vmem_limit_bytes=vmem_limit),
    )(e2, cand_t)

    # lane 0 of each valid row holds that row's loss; padded rows are dropped.
    return jnp.sum(per_row[:B, 0]) / B


def _ref_loss(estimate, candidate, temp_tau=1.0):
    """Pure-JAX reference mirroring the PyTorch ClipLoss2D forward."""
    e = estimate.astype(jnp.float32)
    c = candidate.astype(jnp.float32)
    inv_ne = 1.0 / (EPS + jnp.sqrt(jnp.sum(e * e, axis=(1, 2))))
    inv_nc = 1.0 / (EPS + jnp.sqrt(jnp.sum(c * c, axis=(1, 2))))
    scores = jnp.einsum('bct,oct,b,o->bo', e, c, inv_ne, inv_nc) / temp_tau
    probs = jax.nn.softmax(scores, axis=1)
    logp = jax.nn.log_softmax(probs, axis=1)
    B = e.shape[0]
    return -jnp.mean(logp[jnp.arange(B), jnp.arange(B)])


if __name__ == "__main__":
    temp_tau = 1.0  # nn.Parameter init value (default ctor)

    key = jax.random.PRNGKey(0)
    k1, k2, k3, k4 = jax.random.split(key, 4)

    # B <= B' as the module's forward asserts.
    B, Bp, C, T = 8, 12, 4, 16
    estimate = jax.random.normal(k1, (B, C, T), dtype=jnp.float32)
    candidate = jax.random.normal(k2, (Bp, C, T), dtype=jnp.float32)
    ref = _ref_loss(estimate, candidate, temp_tau)

    # accuracy path (f32 MXU operands, resident candidate)
    loss_f32 = clip_loss_2d(estimate, candidate, temp_tau, matmul_dtype=jnp.float32)
    jax.block_until_ready(loss_f32)
    assert jnp.allclose(loss_f32, ref, atol=1e-4, rtol=1e-4), (loss_f32, ref)

    # fast path (bf16 MXU operands with f32 accumulation; default for v6e/v7x)
    loss_bf16 = clip_loss_2d(estimate, candidate, temp_tau, matmul_dtype=jnp.bfloat16)
    jax.block_until_ready(loss_bf16)
    assert jnp.allclose(loss_bf16, ref, atol=1e-2, rtol=1e-2), (loss_bf16, ref)

    # K-streaming path (forced tiny VMEM budget so the contraction axis is tiled)
    B2, Bp2, C2, T2 = 8, 12, 4, 96            # N = 384 -> three 128-wide K tiles
    est2 = jax.random.normal(k3, (B2, C2, T2), dtype=jnp.float32)
    cand2 = jax.random.normal(k4, (Bp2, C2, T2), dtype=jnp.float32)
    ref2 = _ref_loss(est2, cand2, temp_tau)
    loss_stream = clip_loss_2d(est2, cand2, temp_tau, matmul_dtype=jnp.float32,
                               vmem_budget_bytes=1)
    jax.block_until_ready(loss_stream)
    assert jnp.allclose(loss_stream, ref2, atol=1e-4, rtol=1e-4), (loss_stream, ref2)

    print("KERNEL_OK")
</pallas_src>

<mosaic_0001>
module attributes {stable_mosaic.version = 11 : i64} {
  func.func @clip_loss_kernel(%arg0: i32, %arg1: i32, %arg2: memref<8x128xf32, #tpu.memory_space<vmem>>, %arg3: memref<128x128xf32, #tpu.memory_space<vmem>>, %arg4: memref<8x128xf32, #tpu.memory_space<vmem>>) attributes {dimension_semantics = [#tpu.dimension_semantics<parallel>, #tpu.dimension_semantics<arbitrary>], iteration_bounds = array<i64: 1, 1>, scalar_prefetch = 0 : i64, scratch_operands = 0 : i64, tpu.core_type = #tpu.core_type<tc>, window_params = [{transform_indices = @transform_0, window_bounds = array<i64: 8, 128>}, {pipeline_mode = #tpu.pipeline_mode<synchronous>, transform_indices = @transform_1, window_bounds = array<i64: 128, 128>}, {transform_indices = @transform_2, window_bounds = array<i64: 8, 128>}]} {
    %c0 = arith.constant 0 : index
    %c0_0 = arith.constant 0 : index
    %0 = vector.load %arg2[%c0, %c0_0] : memref<8x128xf32, #tpu.memory_space<vmem>>, vector<8x128xf32>
    %c0_1 = arith.constant 0 : index
    %c0_2 = arith.constant 0 : index
    %1 = vector.load %arg3[%c0_1, %c0_2] : memref<128x128xf32, #tpu.memory_space<vmem>>, vector<128x128xf32>
    %cst = arith.constant dense<0.000000e+00> : vector<8x128xf32>
    %2 = tpu.matmul %0, %1, %cst {dimension_numbers = #tpu.dot_dimension_numbers<[1], [0], [0], [1], [0, 0, 1, 1], [], []>} : vector<8x128xf32>, vector<128x128xf32>, vector<8x128xf32> -> vector<8x128xf32>
    %3 = tpu.iota {dimensions = array<i32: 1>} : vector<8x128xi32>
    %c12_i32 = arith.constant 12 : i32
    %4 = vector.broadcast %c12_i32 : i32 to vector<8x128xi32>
    %5 = arith.cmpi slt, %3, %4 : vector<8x128xi32>
    %cst_3 = arith.constant -1.000000e+30 : f32
    %6 = vector.broadcast %cst_3 : f32 to vector<8x128xf32>
    %7 = arith.select %5, %2, %6 : vector<8x128xi1>, vector<8x128xf32>
    %c8_i32 = arith.constant 8 : i32
    %8 = arith.muli %arg0, %c8_i32 : i32
    %9 = tpu.iota {dimensions = array<i32: 0>} : vector<8x128xi32>
    %10 = vector.broadcast %8 : i32 to vector<8x128xi32>
    %11 = arith.addi %10, %9 : vector<8x128xi32>
    %12 = arith.cmpi eq, %11, %3 : vector<8x128xi32>
    %cst_4 = arith.constant 0.000000e+00 : f32
    %13 = vector.broadcast %cst_4 : f32 to vector<8x128xf32>
    %14 = arith.select %12, %7, %13 : vector<8x128xi1>, vector<8x128xf32>
    %cst_5 = arith.constant dense<0.000000e+00> : vector<8xf32>
    %15 = vector.multi_reduction <add>, %14, %cst_5 [1] : vector<8x128xf32> to vector<8xf32>
    %16 = vector.shape_cast %15 : vector<8xf32> to vector<8x1xf32>
    %17 = math.exp %7 : vector<8x128xf32>
    %18 = math.exp %16 : vector<8x1xf32>
    %cst_6 = arith.constant dense<0.000000e+00> : vector<8xf32>
    %19 = vector.multi_reduction <add>, %17, %cst_6 [1] : vector<8x128xf32> to vector<8xf32>
    %20 = vector.shape_cast %19 : vector<8xf32> to vector<8x1xf32>
    %cst_7 = arith.constant 1.000000e+00 : f32
    %21 = vector.broadcast %cst_7 : f32 to vector<8x1xf32>
    %22 = arith.divf %21, %20 : vector<8x1xf32>
    %23 = vector.broadcast %22 : vector<8x1xf32> to vector<8x128xf32>
    %24 = arith.mulf %17, %23 : vector<8x128xf32>
    %25 = arith.mulf %18, %22 : vector<8x1xf32>
    %26 = math.exp %24 : vector<8x128xf32>
    %c12_i32_8 = arith.constant 12 : i32
    %27 = vector.broadcast %c12_i32_8 : i32 to vector<8x128xi32>
    %28 = arith.cmpi slt, %3, %27 : vector<8x128xi32>
    %cst_9 = arith.constant 0.000000e+00 : f32
    %29 = vector.broadcast %cst_9 : f32 to vector<8x128xf32>
    %30 = arith.select %28, %26, %29 : vector<8x128xi1>, vector<8x128xf32>
    %cst_10 = arith.constant dense<0.000000e+00> : vector<8xf32>
    %31 = vector.multi_reduction <add>, %30, %cst_10 [1] : vector<8x128xf32> to vector<8xf32>
    %32 = vector.shape_cast %31 : vector<8xf32> to vector<8x1xf32>
    %33 = math.log %32 : vector<8x1xf32>
    %34 = arith.subf %33, %25 : vector<8x1xf32>
    %35 = vector.shape_cast %34 : vector<8x1xf32> to vector<8x1xf32>
    %36 = vector.broadcast %35 : vector<8x1xf32> to vector<8x128xf32>
    %c0_11 = arith.constant 0 : index
    %c0_12 = arith.constant 0 : index
    %37 = vector.load %arg4[%c0_11, %c0_12] : memref<8x128xf32, #tpu.memory_space<vmem>>, vector<8x128xf32>
    tpu.vector_store %arg4[%c0_11, %c0_12], %36 {strides = array<i32>} : memref<8x128xf32, #tpu.memory_space<vmem>>, vector<8x128xf32>,
    return
  }
  func.func @transform_0(%arg0: i32, %arg1: i32) -> (i32, i32) {
    %c0_i32 = arith.constant 0 : i32
    return %arg0, %arg1 : i32, i32
  }
  func.func @transform_1(%arg0: i32, %arg1: i32) -> (i32, i32) {
    %c0_i32 = arith.constant 0 : i32
    %c0_i32_0 = arith.constant 0 : i32
    return %arg1, %c0_i32 : i32, i32
  }
  func.func @transform_2(%arg0: i32, %arg1: i32) -> (i32, i32) {
    %c0_i32 = arith.constant 0 : i32
    %c0_i32_0 = arith.constant 0 : i32
    return %arg0, %c0_i32 : i32, i32
  }
}

</mosaic_0001>

<llo_original>
// kernel: tpu_custom_call.1
$region0: #{tpu_custom_call.1}
  #allocation0 [shape = 'u32[]', space=smem, size = 0x4, offset = 0x4, fixed_abs, tag = 'smem constant byte address 0x4 - core index']
  #allocation1 [shape = 'u32[144,128]{1,0:T(1,128)}', space=vmem, size = 0x12000, scoped, tag = 'internal scratch']
  %s0 = inlined_call_operand.hbm [shape: f32[8,128], index: 0, kind: input, shape index: {}]
  %s1 = inlined_call_operand.hbm [shape: f32[128,128], index: 1, kind: input, shape index: {}]
  %s2 = inlined_call_operand.hbm [shape: f32[8,128], index: 2, kind: output, shape index: {}]
  %s3 = sld [smem:[#allocation0]]
  $region26: #{tpu_custom_call.1} parent=0
    _
  %s5 = ssub.s32 1, %s3
  %s6 = scalar_select 0, %s5, %s3
  $region1: #{tpu_custom_call.1} parent=0
    #allocation2 [shape = 'u8[4096]{0}', space=vmem, size = 0x1000, scoped, tag = 'input window, operand 0, single buffered']
    #allocation3 [shape = 's32[1]{0}', space=sflag, size = 0x4, scoped, tag = 'scoped memory for tpu_custom_call.1']
    #allocation4 [shape = 's32[1]{0}', space=sflag, size = 0x4, scoped, tag = 'scoped memory for tpu_custom_call.1']
    #allocation5 [shape = 'u8[65536]{0}', space=vmem, size = 0x10000, scoped, tag = 'input window, operand 1, single buffered']
    #allocation6 [shape = 's32[1]{0}', space=sflag, size = 0x4, scoped, tag = 'scoped memory for tpu_custom_call.1']
    #allocation7 [shape = 'u8[4096]{0}', space=vmem, size = 0x1000, scoped, tag = 'output window, operand 0, single buffered']
    %7 = vsyncpa [#allocation3], 0
    %8 = vsyncpa [#allocation6], 0
    %9 = vsyncpa [#allocation4], 0
    // Predicated region
    $region2: #{tpu_custom_call.1} parent=1 // pred_check
      _
    $region3: #{tpu_custom_call.1} parent=1 // pred_check_branch
      %11 = sbr.rel (0) target = $region5
    $region4: #{tpu_custom_call.1} parent=1 // pred_region
      %s13 = ssub.s32 128, 128
      %14 = vsyncadd [#allocation3], %s13
      %s16 = sshll.u32 [#allocation2], 4
      %s17 = int_to_ptr.vmem [resolvable:$true] %s16
      %19 = dma.hbm_to_vmem [thread:$0]  %s0, 128, %s17, [#allocation3]
    $region5: #{tpu_custom_call.1} parent=1 // pred_fallthru
      _
    // Predicated region
    $region6: #{tpu_custom_call.1} parent=1 // pred_check
      _
    $region7: #{tpu_custom_call.1} parent=1 // pred_check_branch
      %21 = sbr.rel (0) target = $region9
    $region8: #{tpu_custom_call.1} parent=1 // pred_region
      %s23 = ssub.s32 2048, 2048
      %24 = vsyncadd [#allocation6], %s23
      %s25 = sshll.u32 [#allocation5], 4
      %s26 = int_to_ptr.vmem [resolvable:$true] %s25
      %31 = dma.hbm_to_vmem [thread:$0]  %s1, 2048, %s26, [#allocation6], 128, 128, 8
    $region9: #{tpu_custom_call.1} parent=1 // pred_fallthru
      _
    // Predicated region
    $region10: #{tpu_custom_call.1} parent=1 // pred_check
      _
    $region11: #{tpu_custom_call.1} parent=1 // pred_check_branch
      %33 = sbr.rel (0) target = $region13
    $region12: #{tpu_custom_call.1} parent=1 // pred_region
      %34 = dma.done [#allocation3], 128
    $region13: #{tpu_custom_call.1} parent=1 // pred_fallthru
      _
    // Predicated region
    $region14: #{tpu_custom_call.1} parent=1 // pred_check
      _
    $region15: #{tpu_custom_call.1} parent=1 // pred_check_branch
      %36 = sbr.rel (0) target = $region17
    $region16: #{tpu_custom_call.1} parent=1 // pred_region
      %37 = dma.done [#allocation6], 2048
    $region17: #{tpu_custom_call.1} parent=1 // pred_fallthru
      _
    %v38 = vld [vmem:[#allocation2] sm:$0xff]
    %v39 = vld [vmem:[#allocation5] sm:$0xff]
    %v40 = vld [vmem:[#allocation5 + $0x8] sm:$0xff]
    %v41 = vld [vmem:[#allocation5 + $0x10] sm:$0xff]
    %v42 = vld [vmem:[#allocation5 + $0x18] sm:$0xff]
    %v43 = vld [vmem:[#allocation5 + $0x20] sm:$0xff]
    %v44 = vld [vmem:[#allocation5 + $0x28] sm:$0xff]
    %v45 = vld [vmem:[#allocation5 + $0x30] sm:$0xff]
    %v46 = vld [vmem:[#allocation5 + $0x38] sm:$0xff]
    %v47 = vld [vmem:[#allocation5 + $0x40] sm:$0xff]
    %v48 = vld [vmem:[#allocation5 + $0x48] sm:$0xff]
    %v49 = vld [vmem:[#allocation5 + $0x50] sm:$0xff]
    %v50 = vld [vmem:[#allocation5 + $0x58] sm:$0xff]
    %v51 = vld [vmem:[#allocation5 + $0x60] sm:$0xff]
    %v52 = vld [vmem:[#allocation5 + $0x68] sm:$0xff]
    %v53 = vld [vmem:[#allocation5 + $0x70] sm:$0xff]
    %v54 = vld [vmem:[#allocation5 + $0x78] sm:$0xff]
    %55 = vmatprep.subr.mxu0 0.0
    %56 = vmatpush1.msra.mxu0 %v39
    %57 = vmatprep.subr.mxu0 0.0
    %58 = vmatpush1.msra.mxu0 %v40
    %59 = vmatprep.subr.mxu0 0.0
    %60 = vmatpush1.msra.mxu0 %v41
    %61 = vmatprep.subr.mxu0 0.0
    %62 = vmatpush1.msra.mxu0 %v42
    %63 = vmatprep.subr.mxu0 0.0
    %64 = vmatpush1.msra.mxu0 %v43
    %65 = vmatprep.subr.mxu0 0.0
    %66 = vmatpush1.msra.mxu0 %v44
    %67 = vmatprep.subr.mxu0 0.0
    %68 = vmatpush1.msra.mxu0 %v45
    %69 = vmatprep.subr.mxu0 0.0
    %70 = vmatpush1.msra.mxu0 %v46
    %71 = vmatprep.subr.mxu0 0.0
    %72 = vmatpush1.msra.mxu0 %v47
    %73 = vmatprep.subr.mxu0 0.0
    %74 = vmatpush1.msra.mxu0 %v48
    %75 = vmatprep.subr.mxu0 0.0
    %76 = vmatpush1.msra.mxu0 %v49
    %77 = vmatprep.subr.mxu0 0.0
    %78 = vmatpush1.msra.mxu0 %v50
    %79 = vmatprep.subr.mxu0 0.0
    %80 = vmatpush1.msra.mxu0 %v51
    %81 = vmatprep.subr.mxu0 0.0
    %82 = vmatpush1.msra.mxu0 %v52
    %83 = vmatprep.subr.mxu0 0.0
    %84 = vmatpush1.msra.mxu0 %v53
    %85 = vmatprep.subr.mxu0 0.0
    %86 = vmatpush1.msra.mxu0 %v54
    %87 = vmatprep.subr.mxu0 0.0
    %88 = vmatpush1.msra.mxu0 0.0
    %89 = vmatprep.subr.mxu0 0.0
    %90 = vmatpush1.msra.mxu0 0.0
    %91 = vmatprep.subr.mxu0 0.0
    %92 = vmatpush1.msra.mxu0 0.0
    %93 = vmatprep.subr.mxu0 0.0
    %94 = vmatpush1.msra.mxu0 0.0
    %95 = vmatprep.subr.mxu0 0.0
    %96 = vmatpush1.msra.mxu0 0.0
    %97 = vmatprep.subr.mxu0 0.0
    %98 = vmatpush1.msra.mxu0 0.0
    %99 = vmatprep.subr.mxu0 0.0
    %100 = vmatpush1.msra.mxu0 0.0
    %101 = vmatprep.subr.mxu0 0.0
    %102 = vmatpush1.msra.mxu0 0.0
    %103 = vmatprep.subr.mxu0 0.0
    %104 = vmatpush1.msra.mxu0 0.0
    %105 = vmatprep.subr.mxu0 0.0
    %106 = vmatpush1.msra.mxu0 0.0
    %107 = vmatprep.subr.mxu0 0.0
    %108 = vmatpush1.msra.mxu0 0.0
    %109 = vmatprep.subr.mxu0 0.0
    %110 = vmatpush1.msra.mxu0 0.0
    %111 = vmatprep.subr.mxu0 0.0
    %112 = vmatpush1.msra.mxu0 0.0
    %113 = vmatprep.subr.mxu0 0.0
    %114 = vmatpush1.msra.mxu0 0.0
    %115 = vmatprep.subr.mxu0 0.0
    %116 = vmatpush1.msra.mxu0 0.0
    %117 = vmatprep.subr.mxu0 0.0
    %118 = vmatpush1.msra.mxu0 0.0
    %119 = vmatprep.mubr.f32.mxu0 0.0
    %120 = vmatmul.mubr.f32.gmra.mrb[0].mxu0 %v38
    %v121 = vpop.f32.mrb[0].mxu0
    %v122 = vadd.f32 0.0, %v121
    %v123 = vpop.f32.mrb[0].mxu0
    %124 = vdwg.mxu0
    %v125 = vlaneseq
    %v126 = vand.u32 %v125, 127
    %vm127 = vcmp.lt.s32.totalorder %v126, 12
    %v128 = vsel %vm127, %v122, -1e+30
    %s129 = smul.u32 0, 8
    %v130 = vlaneseq
    %v131 = vshrl.u32 %v130, 7
    %v132 = vstv %s129
    %v133 = vadd.s32 %v132, %v131
    %vm134 = vcmp.eq.s32.totalorder %v133, %v126
    %v135 = vsel %vm134, %v128, 0.0
    %136 = vadd.xlane.f32.xlu0 %v135
    %v137 = vpop.xlane.xlu0 %136
    %v138 = vmul.f32 %v128, 1.442695
    %v139 = vpow.pop %v138
    %v140 = vmul.f32 %v137, 1.442695
    %v141 = vpow.pop %v140
    %142 = vadd.xlane.f32.xlu0 %v139
    %v143 = vpop.xlane.xlu0 %142
    %v144 = vrcp.pop %v143
    %v145 = vmul.f32 1.0, %v144
    %v146 = vmul.f32 %v139, %v145
    %v147 = vmul.f32 %v141, %v145
    %v148 = vmul.f32 %v146, 1.442695
    %v149 = vpow.pop %v148
    %v150 = vsel %vm127, %v149, 0.0
    %151 = vadd.xlane.f32.xlu0 %v150
    %v152 = vpop.xlane.xlu0 %151
    %v153 = vlog2.pop %v152
    %v154 = vmul.f32 %v153, 0.6931472
    %v155 = vsub.f32 %v154, %v147
    %156 = vst [vmem:[#allocation7] sm:$0xff] %v155
    // Predicated region
    $region18: #{tpu_custom_call.1} parent=1 // pred_check
      _
    $region19: #{tpu_custom_call.1} parent=1 // pred_check_branch
      %158 = sbr.rel (0) target = $region21
    $region20: #{tpu_custom_call.1} parent=1 // pred_region
      %s160 = ssub.s32 128, 128
      %161 = vsyncadd [#allocation4], %s160
      %s163 = sshll.u32 [#allocation7], 4
      %s164 = int_to_ptr.vmem [resolvable:$true] %s163
      %166 = dma.vmem_to_hbm [thread:$0]  %s164, 128, %s2, [#allocation4]
    $region21: #{tpu_custom_call.1} parent=1 // pred_fallthru
      _
    // Predicated region
    $region22: #{tpu_custom_call.1} parent=1 // pred_check
      _
    $region23: #{tpu_custom_call.1} parent=1 // pred_check_branch
      %168 = sbr.rel (0) target = $region25
    $region24: #{tpu_custom_call.1} parent=1 // pred_region
      %169 = dma.done [#allocation4], 128
    $region25: #{tpu_custom_call.1} parent=1 // pred_fallthru
      _
    %170 = vsyncpa [#allocation3], 1
    %171 = vsyncpa [#allocation6], 1
    %172 = vsyncpa [#allocation4], 1

</llo_original>
